<compile_context>
chip_gen: v7x
topology: tpu7x:2x2x1
jax: 0.10.0
libtpu: 0.0.40
codegen_flags: <defaults>
</compile_context>

<pallas_src>
from functools import partial

import jax
import jax.numpy as jnp
import numpy as np
from jax.experimental import pallas as pl
from jax.experimental.pallas import tpu as pltpu

# ----- module hyper-params (small, consistent with the PyTorch module) -----
BATCH = 2
IN_CHANNELS = 4
IMAGE_SIZE = 16
PATCH_SIZE = 4
EMBED_DIM = 32

PATCHES_PER_DIM = IMAGE_SIZE // PATCH_SIZE            # 4
NUM_PATCHES = PATCHES_PER_DIM ** 2                    # 16
PATCH_DIM = IN_CHANNELS * PATCH_SIZE * PATCH_SIZE     # 64 (= conv fan-in K)


def patch_embed_kernel(p_ref, wb_ref, o_ref):
    """o = p @ W + b — the whole Conv2d as one MXU matmul + one VPU add.

    p_ref  : (B*N, K)   flattened patches (rows = every patch of every image)
    wb_ref : (K+1, E)   rows [0:K] = conv weight as (in, out); row K = bias.
                        K = 64 is sublane-aligned, so both slices are free.
    o_ref  : (B*N, E)
    """
    k = p_ref.shape[1]  # static at trace time
    o_ref[...] = (
        jnp.dot(p_ref[...], wb_ref[:k, :], preferred_element_type=jnp.float32)
        + wb_ref[k:, :]                       # (1, E) bias broadcast
    ).astype(o_ref.dtype)


def init_patch_embedding_params(w_conv, b_conv):
    """Module-init-time (one-off) layout plumbing:
    conv weight (E, C, ph, pw) -> (K, E), bias (E,) -> (1, E), concatenated
    into a single (K+1, E) operand so the forward pays one weight DMA and zero
    per-call transposes."""
    E = w_conv.shape[0]
    K = w_conv.shape[1] * w_conv.shape[2] * w_conv.shape[3]
    w2d = w_conv.reshape(E, K).T              # (K, E)
    b2d = b_conv.reshape(1, E)                # (1, E)
    return jnp.concatenate([w2d, b2d], axis=0)  # (K+1, E)


@jax.jit
def patch_embedding(x, wb):
    """x: (B, C, H, W) f32, wb: (K+1, E) f32 from init_patch_embedding_params.
    Returns (B, N, E) == Conv2d(stride=patch)(x).flatten(2).transpose(1, 2)."""
    B, C, H, W = x.shape
    ph = pw = PATCH_SIZE
    hp, wp = H // ph, W // pw
    n = hp * wp
    K = C * ph * pw
    E = wb.shape[1]
    rows = B * n

    # im2col: pure layout (no FLOPs); patch vector ordered (c, kh, kw) to match
    # the OIHW conv-weight reshape.  allow_input_fusion below lets XLA fuse this
    # producer into the Pallas custom call (no separate launch / HBM round trip).
    patches = (
        x.reshape(B, C, hp, ph, wp, pw)
        .transpose(0, 2, 4, 1, 3, 5)          # (B, hp, wp, C, ph, pw)
        .reshape(rows, K)                     # (B*N, K)
    )

    # Grid-less pallas_call: single kernel invocation, whole operands in VMEM,
    # no grid-loop / pipeline bookkeeping, 2 input DMAs + 1 output DMA.
    # TODO(synk): at ViT scale, switch to a row-blocked grid with
    # dimension_semantics=("parallel",) (>=2 blocks for the 2 v7x TCs),
    # 128-aligned E, and bf16 inputs with f32 accumulation.
    out2d = pl.pallas_call(
        patch_embed_kernel,
        out_shape=jax.ShapeDtypeStruct((rows, E), jnp.float32),
        in_specs=[
            pl.BlockSpec(memory_space=pltpu.MemorySpace.VMEM),   # patches
            pl.BlockSpec(memory_space=pltpu.MemorySpace.VMEM),   # fused W|b
        ],
        out_specs=pl.BlockSpec(memory_space=pltpu.MemorySpace.VMEM),
        compiler_params=pltpu.CompilerParams(
            allow_input_fusion=[True, False],  # fuse im2col producer; wb is a leaf
        ),
    )(patches, wb)

    # flatten(2).transpose(1,2) of the PyTorch forward == this output layout.
    return out2d.reshape(B, n, E)


def reference(x, w_conv, b_conv):
    """Independent pure-JAX reference mirroring the PyTorch forward."""
    y = jax.lax.conv_general_dilated(
        x, w_conv,
        window_strides=(PATCH_SIZE, PATCH_SIZE),
        padding="VALID",
        dimension_numbers=("NCHW", "OIHW", "NCHW"),
    )
    y = y + b_conv[None, :, None, None]               # (B, E, hp, wp)
    B, E, hp, wp = y.shape
    y = y.reshape(B, E, hp * wp).transpose(0, 2, 1)   # flatten(2).transpose(1,2)
    return y


if __name__ == "__main__":
    key = jax.random.PRNGKey(0)
    kx, kw, kb = jax.random.split(key, 3)

    x = jax.random.normal(
        kx, (BATCH, IN_CHANNELS, IMAGE_SIZE, IMAGE_SIZE), jnp.float32
    )
    # PyTorch Conv2d default init: uniform(-1/sqrt(fan_in), 1/sqrt(fan_in)).
    bound = 1.0 / np.sqrt(PATCH_DIM)
    w_conv = jax.random.uniform(
        kw, (EMBED_DIM, IN_CHANNELS, PATCH_SIZE, PATCH_SIZE),
        jnp.float32, -bound, bound,
    )
    b_conv = jax.random.uniform(kb, (EMBED_DIM,), jnp.float32, -bound, bound)

    # "Module init": fuse weight+bias into the kernel's (K+1, E) operand once.
    wb = init_patch_embedding_params(w_conv, b_conv)

    out = patch_embedding(x, wb)
    out = jax.block_until_ready(out)

    ref = reference(x, w_conv, b_conv)
    np.testing.assert_allclose(
        np.asarray(out), np.asarray(ref), rtol=1e-5, atol=1e-5
    )
    print("KERNEL_OK")
</pallas_src>

<mosaic_0001>
module attributes {stable_mosaic.version = 11 : i64} {
  func.func @patch_embed_kernel(%arg0: memref<32x64xf32, #tpu.memory_space<vmem>>, %arg1: memref<65x32xf32, #tpu.memory_space<vmem>>, %arg2: memref<32x32xf32, #tpu.memory_space<vmem>>) attributes {dimension_semantics = [], scalar_prefetch = 0 : i64, scratch_operands = 0 : i64, tpu.core_type = #tpu.core_type<tc>} {
    %c0 = arith.constant 0 : index
    %c0_0 = arith.constant 0 : index
    %0 = vector.load %arg0[%c0, %c0_0] : memref<32x64xf32, #tpu.memory_space<vmem>>, vector<32x64xf32>
    %c0_1 = arith.constant 0 : index
    %c0_2 = arith.constant 0 : index
    %1 = vector.load %arg1[%c0_1, %c0_2] : memref<65x32xf32, #tpu.memory_space<vmem>>, vector<64x32xf32>
    %cst = arith.constant dense<0.000000e+00> : vector<32x32xf32>
    %2 = tpu.matmul %0, %1, %cst {dimension_numbers = #tpu.dot_dimension_numbers<[1], [0], [0], [1], [0, 0, 1, 1], [], []>} : vector<32x64xf32>, vector<64x32xf32>, vector<32x32xf32> -> vector<32x32xf32>
    %c64 = arith.constant 64 : index
    %c0_3 = arith.constant 0 : index
    %3 = vector.load %arg1[%c64, %c0_3] : memref<65x32xf32, #tpu.memory_space<vmem>>, vector<1x32xf32>
    %4 = vector.broadcast %3 : vector<1x32xf32> to vector<32x32xf32>
    %5 = arith.addf %2, %4 : vector<32x32xf32>
    %c0_4 = arith.constant 0 : index
    %c0_5 = arith.constant 0 : index
    %6 = vector.load %arg2[%c0_4, %c0_5] : memref<32x32xf32, #tpu.memory_space<vmem>>, vector<32x32xf32>
    tpu.vector_store %arg2[%c0_4, %c0_5], %5 {strides = array<i32>} : memref<32x32xf32, #tpu.memory_space<vmem>>, vector<32x32xf32>,
    return
  }
}

</mosaic_0001>

<llo_original>
// kernel: patch_embedding.1
$region0: #{patch_embedding.1}
  #allocation0 [shape = 'u32[]', space=smem, size = 0x4, offset = 0x4, fixed_abs, tag = 'smem constant byte address 0x4 - core index']
  #allocation1 [shape = 'u32[144,128]{1,0:T(1,128)}', space=vmem, size = 0x12000, scoped, tag = 'internal scratch']
  %s0 = inlined_call_operand.vmem [shape: f32[32,64], index: 0, kind: input, shape index: {}]
  %s1 = inlined_call_operand.vmem [shape: f32[65,32], index: 1, kind: input, shape index: {}]
  %s2 = inlined_call_operand.hbm [shape: f32[32,32], index: 2, kind: output, shape index: {}]
  %s3 = sld [smem:[#allocation0]]
  $region18: #{patch_embedding.1} parent=0
    _
  %s5 = ssub.s32 1, %s3
  %s6 = scalar_select 0, %s5, %s3
  $region1: #{patch_embedding.1} parent=0
    #allocation2 [shape = 'u8[16384]{0}', space=vmem, size = 0x4000, scoped, tag = 'output window, operand 0, single buffered']
    #allocation3 [shape = 's32[1]{0}', space=sflag, size = 0x4, scoped, tag = 'scoped memory for patch_embedding.1']
    %7 = vsyncpa [#allocation3], 0
    // Predicated region
    $region2: #{patch_embedding.1} parent=1 // pred_check
      _
    $region3: #{patch_embedding.1} parent=1 // pred_check_branch
      %9 = sbr.rel (0) target = $region5
    $region4: #{patch_embedding.1} parent=1 // pred_region
      _
    $region5: #{patch_embedding.1} parent=1 // pred_fallthru
      _
    // Predicated region
    $region6: #{patch_embedding.1} parent=1 // pred_check
      _
    $region7: #{patch_embedding.1} parent=1 // pred_check_branch
      %11 = sbr.rel (0) target = $region9
    $region8: #{patch_embedding.1} parent=1 // pred_region
      _
    $region9: #{patch_embedding.1} parent=1 // pred_fallthru
      _
    %v12 = vld [vmem:[%s0] sm:$0xff]
    %v13 = vld [vmem:[%s0 + $0x8] sm:$0xff]
    %v14 = vld [vmem:[%s0 + $0x10] sm:$0xff]
    %v15 = vld [vmem:[%s0 + $0x18] sm:$0xff]
    %v16 = vld [vmem:[%s1] sm:$0xff]
    %v17 = vld [vmem:[%s1 + $0x8] sm:$0xff]
    %v18 = vld [vmem:[%s1 + $0x10] sm:$0xff]
    %v19 = vld [vmem:[%s1 + $0x18] sm:$0xff]
    %v20 = vld [vmem:[%s1 + $0x20] sm:$0xff]
    %v21 = vld [vmem:[%s1 + $0x28] sm:$0xff]
    %v22 = vld [vmem:[%s1 + $0x30] sm:$0xff]
    %v23 = vld [vmem:[%s1 + $0x38] sm:$0xff]
    %v24 = vld [vmem:[%s1 + $0x40] sm:$0x1]
    %v25 = vlaneseq
    %v26 = vshrl.u32 %v25, 7
    %v27 = vsub.s32 0, %v26
    %v28 = vrot.slane %v24, %v27
    %vm29 = vcmask 523264
    %v31 = vsel %vm29, %v12, 0
    %v34 = vsel %vm29, %v13, 0
    %v37 = vsel %vm29, %v14, 0
    %v40 = vsel %vm29, %v15, 0
    %42 = vmatprep.subr.mxu0 0.0
    %43 = vmatpush1.msra.mxu0 %v16
    %44 = vmatprep.subr.mxu0 0.0
    %45 = vmatpush1.msra.mxu0 %v17
    %46 = vmatprep.subr.mxu0 0.0
    %47 = vmatpush1.msra.mxu0 %v18
    %48 = vmatprep.subr.mxu0 0.0
    %49 = vmatpush1.msra.mxu0 %v19
    %50 = vmatprep.subr.mxu0 0.0
    %51 = vmatpush1.msra.mxu0 %v20
    %52 = vmatprep.subr.mxu0 0.0
    %53 = vmatpush1.msra.mxu0 %v21
    %54 = vmatprep.subr.mxu0 0.0
    %55 = vmatpush1.msra.mxu0 %v22
    %56 = vmatprep.subr.mxu0 0.0
    %57 = vmatpush1.msra.mxu0 %v23
    %58 = vmatprep.subr.mxu0 0.0
    %59 = vmatpush1.msra.mxu0 0.0
    %60 = vmatprep.subr.mxu0 0.0
    %61 = vmatpush1.msra.mxu0 0.0
    %62 = vmatprep.subr.mxu0 0.0
    %63 = vmatpush1.msra.mxu0 0.0
    %64 = vmatprep.subr.mxu0 0.0
    %65 = vmatpush1.msra.mxu0 0.0
    %66 = vmatprep.subr.mxu0 0.0
    %67 = vmatpush1.msra.mxu0 0.0
    %68 = vmatprep.subr.mxu0 0.0
    %69 = vmatpush1.msra.mxu0 0.0
    %70 = vmatprep.subr.mxu0 0.0
    %71 = vmatpush1.msra.mxu0 0.0
    %72 = vmatprep.subr.mxu0 0.0
    %73 = vmatpush1.msra.mxu0 0.0
    %74 = vmatprep.subr.mxu0 0.0
    %75 = vmatpush1.msra.mxu0 0.0
    %76 = vmatprep.subr.mxu0 0.0
    %77 = vmatpush1.msra.mxu0 0.0
    %78 = vmatprep.subr.mxu0 0.0
    %79 = vmatpush1.msra.mxu0 0.0
    %80 = vmatprep.subr.mxu0 0.0
    %81 = vmatpush1.msra.mxu0 0.0
    %82 = vmatprep.subr.mxu0 0.0
    %83 = vmatpush1.msra.mxu0 0.0
    %84 = vmatprep.subr.mxu0 0.0
    %85 = vmatpush1.msra.mxu0 0.0
    %86 = vmatprep.subr.mxu0 0.0
    %87 = vmatpush1.msra.mxu0 0.0
    %88 = vmatprep.subr.mxu0 0.0
    %89 = vmatpush1.msra.mxu0 0.0
    %90 = vmatprep.subr.mxu0 0.0
    %91 = vmatpush1.msra.mxu0 0.0
    %92 = vmatprep.subr.mxu0 0.0
    %93 = vmatpush1.msra.mxu0 0.0
    %94 = vmatprep.subr.mxu0 0.0
    %95 = vmatpush1.msra.mxu0 0.0
    %96 = vmatprep.subr.mxu0 0.0
    %97 = vmatpush1.msra.mxu0 0.0
    %98 = vmatprep.subr.mxu0 0.0
    %99 = vmatpush1.msra.mxu0 0.0
    %100 = vmatprep.subr.mxu0 0.0
    %101 = vmatpush1.msra.mxu0 0.0
    %102 = vmatprep.subr.mxu0 0.0
    %103 = vmatpush1.msra.mxu0 0.0
    %104 = vmatprep.subr.mxu0 0.0
    %105 = vmatpush1.msra.mxu0 0.0
    %106 = vmatprep.mubr.f32.mxu0 0.0
    %107 = vmatmul.mubr.f32.gmra.mrb[0].mxu0 %v31
    %v108 = vpop.f32.mrb[0].mxu0
    %v109 = vadd.f32 %v28, %v108
    %v110 = vpop.f32.mrb[0].mxu0
    %111 = vmatprep.mubr.f32.mxu0 0.0
    %112 = vmatmul.mubr.f32.gmra.mrb[0].mxu0 %v34
    %v113 = vpop.f32.mrb[0].mxu0
    %v114 = vadd.f32 %v28, %v113
    %v115 = vpop.f32.mrb[0].mxu0
    %116 = vmatprep.mubr.f32.mxu0 0.0
    %117 = vmatmul.mubr.f32.gmra.mrb[0].mxu0 %v37
    %v118 = vpop.f32.mrb[0].mxu0
    %v119 = vadd.f32 %v28, %v118
    %v120 = vpop.f32.mrb[0].mxu0
    %121 = vmatprep.mubr.f32.mxu0 0.0
    %122 = vmatmul.mubr.f32.gmra.mrb[0].mxu0 %v40
    %v123 = vpop.f32.mrb[0].mxu0
    %v124 = vadd.f32 %v28, %v123
    %v125 = vpop.f32.mrb[0].mxu0
    %126 = vdwg.mxu0
    %vm127 = vcmask 261120
    %128 = vst.msk [vmem:[#allocation2] sm:$0xff] %vm127, %v109
    %129 = vst.msk [vmem:[#allocation2 + $0x8] sm:$0xff] %vm127, %v114
    %130 = vst.msk [vmem:[#allocation2 + $0x10] sm:$0xff] %vm127, %v119
    %131 = vst.msk [vmem:[#allocation2 + $0x18] sm:$0xff] %vm127, %v124
    // Predicated region
    $region10: #{patch_embedding.1} parent=1 // pred_check
      _
    $region11: #{patch_embedding.1} parent=1 // pred_check_branch
      %133 = sbr.rel (0) target = $region13
    $region12: #{patch_embedding.1} parent=1 // pred_region
      %s135 = ssub.s32 512, 512
      %136 = vsyncadd [#allocation3], %s135
      %s137 = sshll.u32 [#allocation2], 4
      %s138 = int_to_ptr.vmem [resolvable:$true] %s137
      %143 = dma.vmem_to_hbm [thread:$0]  %s138, 512, %s2, [#allocation3], 128, 128, 8
    $region13: #{patch_embedding.1} parent=1 // pred_fallthru
      _
    // Predicated region
    $region14: #{patch_embedding.1} parent=1 // pred_check
      _
    $region15: #{patch_embedding.1} parent=1 // pred_check_branch
      %145 = sbr.rel (0) target = $region17
    $region16: #{patch_embedding.1} parent=1 // pred_region
      %146 = dma.done [#allocation3], 512
    $region17: #{patch_embedding.1} parent=1 // pred_fallthru
      _
    %147 = vsyncpa [#allocation3], 1

</llo_original>
